<compile_context>
chip_gen: v7x
topology: tpu7x:2x2x1
jax: 0.10.0
libtpu: 0.0.40
codegen_flags: <defaults>
</compile_context>

<pallas_src>
import functools

import jax
import jax.numpy as jnp
from jax.experimental import pallas as pl
from jax.experimental.pallas import tpu as pltpu


def _round_up(x, m):
    return (x + m - 1) // m * m


def _vmem_params():
    """(vmem_budget_bytes, vmem_limit_bytes) sized for the local TPU generation."""
    budget, limit = 14 << 20, 48 << 20           # safe on v7x (64 MiB per TC)
    try:
        cap = getattr(pltpu.get_tpu_info(), "vmem_capacity_bytes", 0)
    except Exception:  # pragma: no cover - defensive; keep the conservative default
        cap = 0
    if cap >= (100 << 20):                       # v5e / v6e: 128 MiB per TC
        budget, limit = 40 << 20, 96 << 20
    return budget, limit


# --------------------------------------------------------------------------
# Caption (token-level) cross entropy with ignore_index.
# --------------------------------------------------------------------------
def _caption_ce_kernel(x_ref, lbl_ref, out_ref, *, pad_id, n_rows):
    i = pl.program_id(0)
    tile_n, v = x_ref.shape
    lbl = lbl_ref[...]                                               # (tile_n, 1) int32

    # Tail rows of the last block may read out-of-bounds garbage: mask them
    # BEFORE the exp so inf/NaN can never be produced.
    row = jax.lax.broadcasted_iota(jnp.int32, (tile_n, 1), 0)
    row_valid = (i * tile_n + row) < n_rows                          # (tile_n, 1)
    x = jnp.where(row_valid, x_ref[...], 0).astype(jnp.float32)      # (tile_n, V)

    # logsumexp over the vocab: one exp per element, one log per row.
    m = jnp.max(x, axis=-1, keepdims=True)                           # (tile_n, 1)
    lse = m + jnp.log(jnp.sum(jnp.exp(x - m), axis=-1, keepdims=True))

    # Gather the target logit via a thin (1, V) lane iota broadcast against the
    # (tile_n, 1) label column (no full-tile int32 iota materialized).
    lane_v = jax.lax.broadcasted_iota(jnp.int32, (1, v), 1)
    tgt = jnp.sum(jnp.where(lane_v == lbl, x, 0.0), axis=-1, keepdims=True)

    valid = row_valid & (lbl != pad_id)                              # (tile_n, 1)
    loss_sum = jnp.sum(jnp.where(valid, lse - tgt, 0.0))             # scalar
    count = jnp.sum(valid.astype(jnp.float32))                       # scalar

    # Lane-dense per-tile partials: loss sum -> [0, 0], valid count -> [0, 1].
    sub = jax.lax.broadcasted_iota(jnp.int32, (8, 1), 0)
    lane = jax.lax.broadcasted_iota(jnp.int32, (1, 128), 1)
    vals = jnp.where(lane == 0, loss_sum, jnp.where(lane == 1, count, 0.0))
    out_ref[...] = jnp.where(sub == 0, vals, 0.0)


def _caption_ce_loss_pallas(logits_flat, labels_flat, *, pad_id):
    n, v = logits_flat.shape
    itemsize = jnp.dtype(logits_flat.dtype).itemsize
    budget, vmem_limit = _vmem_params()

    # Per-row live bytes: double-buffered input tile + the in-kernel f32
    # temporaries (masked/upcast x, exp temp, select temp) + label column.
    bytes_per_row = 2 * v * itemsize + 12 * v + 8
    max_rows = max(8, (budget // bytes_per_row) // 8 * 8)

    n_ceil = _round_up(n, 8)
    tile_n = int(min(max_rows, n_ceil))
    # Keep >= 2 grid steps when there is enough work so v7x's two TensorCores
    # (dimension_semantics="parallel") both get a share.
    if tile_n >= n_ceil and n_ceil >= 16:
        tile_n = _round_up(n_ceil // 2, 8)
    num_tiles = (n + tile_n - 1) // tile_n

    labels_2d = labels_flat.reshape(n, 1).astype(jnp.int32)

    partials = pl.pallas_call(
        functools.partial(_caption_ce_kernel, pad_id=pad_id, n_rows=n),
        out_shape=jax.ShapeDtypeStruct((num_tiles, 8, 128), jnp.float32),
        grid_spec=pltpu.PrefetchScalarGridSpec(
            num_scalar_prefetch=0,
            grid=(num_tiles,),
            in_specs=[
                pl.BlockSpec((tile_n, v), lambda i: (i, 0)),
                pl.BlockSpec((tile_n, 1), lambda i: (i, 0)),
            ],
            out_specs=pl.BlockSpec((None, 8, 128), lambda i: (i, 0, 0)),
        ),
        compiler_params=pltpu.CompilerParams(
            dimension_semantics=("parallel",),
            vmem_limit_bytes=vmem_limit),
    )(logits_flat, labels_2d)

    loss_sum = jnp.sum(partials[:, 0, 0])
    count = jnp.sum(partials[:, 0, 1])
    return loss_sum / count


# --------------------------------------------------------------------------
# CLIP contrastive loss (image<->text, diagonal ground truth).
# --------------------------------------------------------------------------
def _clip_contrastive_kernel(img_ref, txt_ref, scale_ref, out_ref):
    scale = scale_ref[0]                                             # SMEM scalar (f32)
    # Fold logit_scale into the image features (B*D mul) and keep both operands
    # in their native dtype so bf16 features take the native bf16 MXU pass.
    img = img_ref[...] * scale.astype(img_ref.dtype)                 # (B, D)
    txt = txt_ref[...]                                               # (B, D)

    # logits_per_image = scale * img @ txt.T (contraction on D, no transpose).
    logits = jax.lax.dot_general(
        img, txt, (((1,), (1,)), ((), ())),
        preferred_element_type=jnp.float32)                          # (B, B)
    b = logits.shape[0]

    # Diagonal extracted once (shared by both CEs) from thin iotas.
    row = jax.lax.broadcasted_iota(jnp.int32, (b, 1), 0)
    col = jax.lax.broadcasted_iota(jnp.int32, (1, b), 1)
    diag_sum = jnp.sum(jnp.where(row == col, logits, 0.0))           # scalar

    # Row-wise logsumexp (image CE) and column-wise logsumexp (text CE).
    mr = jnp.max(logits, axis=1, keepdims=True)
    lse_r_sum = jnp.sum(mr + jnp.log(jnp.sum(jnp.exp(logits - mr), axis=1, keepdims=True)))
    mc = jnp.max(logits, axis=0, keepdims=True)
    lse_c_sum = jnp.sum(mc + jnp.log(jnp.sum(jnp.exp(logits - mc), axis=0, keepdims=True)))

    loss = 0.5 * ((lse_r_sum - diag_sum) + (lse_c_sum - diag_sum)) / b
    out_ref[...] = jnp.reshape(loss, (1, 1))


def _clip_contrastive_loss_pallas(image_features, text_features, logit_scale):
    b, d = image_features.shape
    itemsize = jnp.dtype(image_features.dtype).itemsize
    # Rough single-block live set: double-buffered feature tiles + (B,B) logits,
    # exp temps and mask.  Guard against v7x's 64 MiB per-TC VMEM.
    footprint = 2 * 2 * b * d * itemsize + 4 * b * b * 4
    # TODO(synk): row-tiled variant (grid over query rows, online column-LSE
    # accumulator) for configurations whose single-block footprint exceeds VMEM.
    assert footprint < (40 << 20), (
        f"clip contrastive single-block footprint {footprint} bytes exceeds the "
        "VMEM guard; a row-tiled variant is required")

    scale = jnp.reshape(jnp.asarray(logit_scale, dtype=jnp.float32), (1,))
    out = pl.pallas_call(
        _clip_contrastive_kernel,
        out_shape=jax.ShapeDtypeStruct((1, 1), jnp.float32),
        grid_spec=pltpu.PrefetchScalarGridSpec(
            num_scalar_prefetch=0,
            grid=(1,),
            in_specs=[
                pl.BlockSpec((b, d), lambda i: (0, 0)),
                pl.BlockSpec((b, d), lambda i: (0, 0)),
                pl.BlockSpec(memory_space=pltpu.MemorySpace.SMEM),
            ],
            out_specs=pl.BlockSpec((1, 1), lambda i: (0, 0)),
        ),
        compiler_params=pltpu.CompilerParams(
            dimension_semantics=("arbitrary",)),
    )(image_features, text_features, scale)
    return out[0, 0]


# --------------------------------------------------------------------------
# CoCaLoss.forward (single device).
# --------------------------------------------------------------------------
def coca_loss(image_features, text_features, logits, labels, logit_scale, *,
              caption_loss_weight, clip_loss_weight, pad_id=0):
    if clip_loss_weight:
        clip_loss = clip_loss_weight * _clip_contrastive_loss_pallas(
            image_features, text_features, logit_scale)
    else:
        clip_loss = jnp.float32(0.0)

    b, s, v = logits.shape
    caption_loss = caption_loss_weight * _caption_ce_loss_pallas(
        logits.reshape(b * s, v),
        labels.reshape(b * s).astype(jnp.int32),
        pad_id=pad_id)
    return clip_loss, caption_loss


# --------------------------------------------------------------------------
# Pure-JAX reference.
# --------------------------------------------------------------------------
def _reference_coca_loss(image_features, text_features, logits, labels, logit_scale,
                         *, caption_loss_weight, clip_loss_weight, pad_id):
    hi = jax.lax.Precision.HIGHEST
    li = logit_scale * jnp.matmul(image_features, text_features.T, precision=hi)
    lt = logit_scale * jnp.matmul(text_features, image_features.T, precision=hi)
    gt = jnp.arange(li.shape[0])

    def ce(lg, lb):
        logp = jax.nn.log_softmax(lg, axis=-1)
        return -jnp.mean(jnp.take_along_axis(logp, lb[:, None], axis=-1))

    clip_loss = clip_loss_weight * 0.5 * (ce(li, gt) + ce(lt, gt))

    logp = jax.nn.log_softmax(logits, axis=-1)
    nll = -jnp.take_along_axis(logp, labels[..., None], axis=-1)[..., 0]
    valid = labels != pad_id
    caption_loss = caption_loss_weight * (
        jnp.sum(jnp.where(valid, nll, 0.0)) / jnp.sum(valid.astype(jnp.float32)))
    return clip_loss, caption_loss


if __name__ == "__main__":
    B, D = 8, 32        # contrastive batch, embedding dim
    S, V = 8, 256       # caption sequence length, vocab size
    PAD_ID = 0
    CLIP_W, CAPTION_W = 1.0, 2.0

    key = jax.random.PRNGKey(0)
    k_img, k_txt, k_log, k_lbl = jax.random.split(key, 4)
    image_features = jax.random.normal(k_img, (B, D), dtype=jnp.float32)
    text_features = jax.random.normal(k_txt, (B, D), dtype=jnp.float32)
    caption_logits = jax.random.normal(k_log, (B, S, V), dtype=jnp.float32)
    caption_labels = jax.random.randint(k_lbl, (B, S), 1, V, dtype=jnp.int32)
    caption_labels = caption_labels.at[:, -1].set(PAD_ID)   # exercise ignore_index
    logit_scale = jnp.float32(2.5)

    clip_loss, caption_loss = coca_loss(
        image_features, text_features, caption_logits, caption_labels, logit_scale,
        caption_loss_weight=CAPTION_W, clip_loss_weight=CLIP_W, pad_id=PAD_ID)
    clip_loss = jax.block_until_ready(clip_loss)
    caption_loss = jax.block_until_ready(caption_loss)

    ref_clip, ref_caption = _reference_coca_loss(
        image_features, text_features, caption_logits, caption_labels, logit_scale,
        caption_loss_weight=CAPTION_W, clip_loss_weight=CLIP_W, pad_id=PAD_ID)
    ref_clip = jax.block_until_ready(ref_clip)
    ref_caption = jax.block_until_ready(ref_caption)

    assert jnp.isfinite(clip_loss), "clip loss is not finite"
    assert jnp.isfinite(caption_loss), "caption loss is not finite"
    # clip loss goes through the MXU in the feature dtype -> modest tolerance.
    assert jnp.allclose(clip_loss, ref_clip, rtol=1e-3, atol=1e-3), (clip_loss, ref_clip)
    assert jnp.allclose(caption_loss, ref_caption, rtol=1e-4, atol=1e-5), (
        caption_loss, ref_caption)

    print("KERNEL_OK")
</pallas_src>

<mosaic_0001>
module attributes {stable_mosaic.version = 11 : i64} {
  func.func @_clip_contrastive_kernel(%arg0: i32, %arg1: memref<8x32xf32, #tpu.memory_space<vmem>>, %arg2: memref<8x32xf32, #tpu.memory_space<vmem>>, %arg3: memref<1xf32, #tpu.memory_space<smem>>, %arg4: memref<1x1xf32, #tpu.memory_space<vmem>>) attributes {dimension_semantics = [#tpu.dimension_semantics<arbitrary>], iteration_bounds = array<i64: 1>, scalar_prefetch = 0 : i64, scratch_operands = 0 : i64, tpu.core_type = #tpu.core_type<tc>, window_params = [{pipeline_mode = #tpu.pipeline_mode<synchronous>, transform_indices = @transform_0, window_bounds = array<i64: 8, 32>}, {pipeline_mode = #tpu.pipeline_mode<synchronous>, transform_indices = @transform_1, window_bounds = array<i64: 8, 32>}, {transform_indices = @transform_2, window_bounds = array<i64: 1>}, {pipeline_mode = #tpu.pipeline_mode<synchronous>, transform_indices = @transform_3, window_bounds = array<i64: 1, 1>}]} {
    %c0 = arith.constant 0 : index
    %0 = memref.load %arg3[%c0] : memref<1xf32, #tpu.memory_space<smem>>
    %c0_0 = arith.constant 0 : index
    %c0_1 = arith.constant 0 : index
    %1 = vector.load %arg1[%c0_0, %c0_1] : memref<8x32xf32, #tpu.memory_space<vmem>>, vector<8x32xf32>
    %2 = vector.broadcast %0 : f32 to vector<8x32xf32>
    %3 = arith.mulf %1, %2 : vector<8x32xf32>
    %c0_2 = arith.constant 0 : index
    %c0_3 = arith.constant 0 : index
    %4 = vector.load %arg2[%c0_2, %c0_3] : memref<8x32xf32, #tpu.memory_space<vmem>>, vector<8x32xf32>
    %cst = arith.constant dense<0.000000e+00> : vector<8x8xf32>
    %5 = tpu.matmul %3, %4, %cst {dimension_numbers = #tpu.dot_dimension_numbers<[1], [1], [0], [0], [0, 0, 1, 0], [], []>} : vector<8x32xf32>, vector<8x32xf32>, vector<8x8xf32> -> vector<8x8xf32>
    %6 = tpu.iota {dimensions = array<i32: 0>} : vector<8x1xi32>
    %7 = tpu.iota {dimensions = array<i32: 1>} : vector<1x8xi32>
    %8 = vector.broadcast %6 : vector<8x1xi32> to vector<8x8xi32>
    %9 = vector.broadcast %7 : vector<1x8xi32> to vector<8x8xi32>
    %10 = arith.cmpi eq, %8, %9 : vector<8x8xi32>
    %cst_4 = arith.constant 0.000000e+00 : f32
    %11 = vector.broadcast %cst_4 : f32 to vector<8x8xf32>
    %12 = arith.select %10, %5, %11 : vector<8x8xi1>, vector<8x8xf32>
    %13 = vector.shape_cast %12 : vector<8x8xf32> to vector<1x8x8xf32>
    %cst_5 = arith.constant dense<0.000000e+00> : vector<1xf32>
    %14 = vector.multi_reduction <add>, %13, %cst_5 [1, 2] : vector<1x8x8xf32> to vector<1xf32>
    %15 = vector.shape_cast %14 : vector<1xf32> to vector<1x1x1xf32>
    %16 = vector.extract %15[0, 0, 0] : f32 from vector<1x1x1xf32>
    %cst_6 = arith.constant dense<0xFF800000> : vector<8xf32>
    %17 = vector.multi_reduction <maximumf>, %5, %cst_6 [1] : vector<8x8xf32> to vector<8xf32>
    %18 = vector.shape_cast %17 : vector<8xf32> to vector<8x1xf32>
    %19 = vector.broadcast %18 : vector<8x1xf32> to vector<8x8xf32>
    %20 = arith.subf %5, %19 : vector<8x8xf32>
    %21 = math.exp %20 : vector<8x8xf32>
    %cst_7 = arith.constant dense<0.000000e+00> : vector<8xf32>
    %22 = vector.multi_reduction <add>, %21, %cst_7 [1] : vector<8x8xf32> to vector<8xf32>
    %23 = vector.shape_cast %22 : vector<8xf32> to vector<8x1xf32>
    %24 = math.log %23 : vector<8x1xf32>
    %25 = arith.addf %18, %24 : vector<8x1xf32>
    %26 = vector.shape_cast %25 : vector<8x1xf32> to vector<1x8x1xf32>
    %cst_8 = arith.constant dense<0.000000e+00> : vector<1xf32>
    %27 = vector.multi_reduction <add>, %26, %cst_8 [1, 2] : vector<1x8x1xf32> to vector<1xf32>
    %28 = vector.shape_cast %27 : vector<1xf32> to vector<1x1x1xf32>
    %29 = vector.extract %28[0, 0, 0] : f32 from vector<1x1x1xf32>
    %cst_9 = arith.constant dense<0xFF800000> : vector<8xf32>
    %30 = vector.multi_reduction <maximumf>, %5, %cst_9 [0] : vector<8x8xf32> to vector<8xf32>
    %31 = vector.shape_cast %30 : vector<8xf32> to vector<1x8xf32>
    %32 = vector.broadcast %31 : vector<1x8xf32> to vector<8x8xf32>
    %33 = arith.subf %5, %32 : vector<8x8xf32>
    %34 = math.exp %33 : vector<8x8xf32>
    %cst_10 = arith.constant dense<0.000000e+00> : vector<8xf32>
    %35 = vector.multi_reduction <add>, %34, %cst_10 [0] : vector<8x8xf32> to vector<8xf32>
    %36 = vector.shape_cast %35 : vector<8xf32> to vector<1x8xf32>
    %37 = math.log %36 : vector<1x8xf32>
    %38 = arith.addf %31, %37 : vector<1x8xf32>
    %39 = vector.shape_cast %38 : vector<1x8xf32> to vector<1x1x8xf32>
    %cst_11 = arith.constant dense<0.000000e+00> : vector<1xf32>
    %40 = vector.multi_reduction <add>, %39, %cst_11 [1, 2] : vector<1x1x8xf32> to vector<1xf32>
    %41 = vector.shape_cast %40 : vector<1xf32> to vector<1x1x1xf32>
    %42 = vector.extract %41[0, 0, 0] : f32 from vector<1x1x1xf32>
    %43 = arith.subf %29, %16 : f32
    %44 = arith.subf %42, %16 : f32
    %45 = arith.addf %43, %44 : f32
    %cst_12 = arith.constant 5.000000e-01 : f32
    %46 = arith.mulf %cst_12, %45 : f32
    %cst_13 = arith.constant 8.000000e+00 : f32
    %47 = arith.divf %46, %cst_13 : f32
    %48 = vector.broadcast %47 : f32 to vector<1x1xf32>
    %c0_14 = arith.constant 0 : index
    %c0_15 = arith.constant 0 : index
    %49 = vector.load %arg4[%c0_14, %c0_15] : memref<1x1xf32, #tpu.memory_space<vmem>>, vector<1x1xf32>
    tpu.vector_store %arg4[%c0_14, %c0_15], %48 {strides = array<i32>} : memref<1x1xf32, #tpu.memory_space<vmem>>, vector<1x1xf32>,
    return
  }
  func.func @transform_0(%arg0: i32) -> (i32, i32) {
    %c0_i32 = arith.constant 0 : i32
    %c0_i32_0 = arith.constant 0 : i32
    %c0_i32_1 = arith.constant 0 : i32
    return %c0_i32, %c0_i32_0 : i32, i32
  }
  func.func @transform_1(%arg0: i32) -> (i32, i32) {
    %c0_i32 = arith.constant 0 : i32
    %c0_i32_0 = arith.constant 0 : i32
    %c0_i32_1 = arith.constant 0 : i32
    return %c0_i32, %c0_i32_0 : i32, i32
  }
  func.func @transform_2(%arg0: i32) -> i32 {
    %c0_i32 = arith.constant 0 : i32
    %c0_i32_0 = arith.constant 0 : i32
    return %c0_i32 : i32
  }
  func.func @transform_3(%arg0: i32) -> (i32, i32) {
    %c0_i32 = arith.constant 0 : i32
    %c0_i32_0 = arith.constant 0 : i32
    %c0_i32_1 = arith.constant 0 : i32
    return %c0_i32, %c0_i32_0 : i32, i32
  }
}

</mosaic_0001>

<llo_original>
// kernel: tpu_custom_call.1
$region0: #{tpu_custom_call.1}
  #allocation0 [shape = 'u32[]', space=smem, size = 0x4, offset = 0x4, fixed_abs, tag = 'smem constant byte address 0x4 - core index']
  #allocation1 [shape = 'u32[144,128]{1,0:T(1,128)}', space=vmem, size = 0x12000, scoped, tag = 'internal scratch']
  #allocation2 [shape = 'f32[1]{0:T(128)S(6)}', space=smem, size = 0x200, scoped, tag = 'scoped memory for tpu_custom_call.1']
  %s0 = inlined_call_operand.hbm [shape: f32[8,32], index: 0, kind: input, shape index: {}]
  %s1 = inlined_call_operand.hbm [shape: f32[8,32], index: 1, kind: input, shape index: {}]
  %s2 = inlined_call_operand.<no memory space> [shape: f32[1], index: 2, kind: input, shape index: {}]
  %s3 = inlined_call_operand.hbm [shape: f32[1,1], index: 3, kind: output, shape index: {}]
  %s4 = sld [smem:[#allocation0]]
  $region30: #{tpu_custom_call.1} parent=0
    _
  %s6 = ssub.s32 1, %s4
  %s7 = scalar_select 0, %s6, %s4
  %8 = sst [smem:[#allocation2]] %s2
  $region1: #{tpu_custom_call.1} parent=0
    #allocation3 [shape = 'u8[4096]{0}', space=vmem, size = 0x1000, scoped, tag = 'input window, operand 0, single buffered']
    #allocation4 [shape = 's32[1]{0}', space=sflag, size = 0x4, scoped, tag = 'scoped memory for tpu_custom_call.1']
    #allocation5 [shape = 's32[1]{0}', space=sflag, size = 0x4, scoped, tag = 'scoped memory for tpu_custom_call.1']
    #allocation6 [shape = 'u8[4096]{0}', space=vmem, size = 0x1000, scoped, tag = 'input window, operand 1, single buffered']
    #allocation7 [shape = 's32[1]{0}', space=sflag, size = 0x4, scoped, tag = 'scoped memory for tpu_custom_call.1']
    #allocation8 [shape = 'u8[512]{0}', space=vmem, size = 0x400, scoped, tag = 'output window, operand 0, single buffered']
    %9 = vsyncpa [#allocation4], 0
    %10 = vsyncpa [#allocation7], 0
    %11 = vsyncpa [#allocation5], 0
    // Predicated region
    $region2: #{tpu_custom_call.1} parent=1 // pred_check
      _
    $region3: #{tpu_custom_call.1} parent=1 // pred_check_branch
      %13 = sbr.rel (0) target = $region5
    $region4: #{tpu_custom_call.1} parent=1 // pred_region
      %s15 = ssub.s32 128, 128
      %16 = vsyncadd [#allocation4], %s15
      %s18 = sshll.u32 [#allocation3], 4
      %s19 = int_to_ptr.vmem [resolvable:$true] %s18
      %21 = dma.hbm_to_vmem [thread:$0]  %s0, 128, %s19, [#allocation4]
    $region5: #{tpu_custom_call.1} parent=1 // pred_fallthru
      _
    // Predicated region
    $region6: #{tpu_custom_call.1} parent=1 // pred_check
      _
    $region7: #{tpu_custom_call.1} parent=1 // pred_check_branch
      %23 = sbr.rel (0) target = $region9
    $region8: #{tpu_custom_call.1} parent=1 // pred_region
      %s25 = ssub.s32 128, 128
      %26 = vsyncadd [#allocation7], %s25
      %s28 = sshll.u32 [#allocation6], 4
      %s29 = int_to_ptr.vmem [resolvable:$true] %s28
      %31 = dma.hbm_to_vmem [thread:$0]  %s1, 128, %s29, [#allocation7]
    $region9: #{tpu_custom_call.1} parent=1 // pred_fallthru
      _
    // Predicated region
    $region10: #{tpu_custom_call.1} parent=1 // pred_check
      _
    $region11: #{tpu_custom_call.1} parent=1 // pred_check_branch
      %33 = sbr.rel (0) target = $region13
    $region12: #{tpu_custom_call.1} parent=1 // pred_region
      _
    $region13: #{tpu_custom_call.1} parent=1 // pred_fallthru
      _
    // Predicated region
    $region14: #{tpu_custom_call.1} parent=1 // pred_check
      _
    $region15: #{tpu_custom_call.1} parent=1 // pred_check_branch
      %35 = sbr.rel (0) target = $region17
    $region16: #{tpu_custom_call.1} parent=1 // pred_region
      %36 = dma.done [#allocation4], 128
    $region17: #{tpu_custom_call.1} parent=1 // pred_fallthru
      _
    // Predicated region
    $region18: #{tpu_custom_call.1} parent=1 // pred_check
      _
    $region19: #{tpu_custom_call.1} parent=1 // pred_check_branch
      %38 = sbr.rel (0) target = $region21
    $region20: #{tpu_custom_call.1} parent=1 // pred_region
      %39 = dma.done [#allocation7], 128
    $region21: #{tpu_custom_call.1} parent=1 // pred_fallthru
      _
    %s40 = sld [smem:[#allocation2]]
    %v41 = vld [vmem:[#allocation3] sm:$0xff]
    %v42 = vstv %s40
    %v43 = vmul.f32 %v41, %v42
    %v44 = vld [vmem:[#allocation6] sm:$0xff]
    %vm45 = vcmask 261120
    %v47 = vsel %vm45, %v43, 0
    %v50 = vsel %vm45, %v44, 0
    %52 = vmatprep.subr.mxu0 0.0
    %53 = vmatpush1.xpose.msra.mxu0 %v50
    %54 = vmatprep.subr.mxu0 0.0
    %55 = vmatpush1.xpose.msra.mxu0 0.0
    %56 = vmatprep.subr.mxu0 0.0
    %57 = vmatpush1.xpose.msra.mxu0 0.0
    %58 = vmatprep.subr.mxu0 0.0
    %59 = vmatpush1.xpose.msra.mxu0 0.0
    %60 = vmatprep.subr.mxu0 0.0
    %61 = vmatpush1.xpose.msra.mxu0 0.0
    %62 = vmatprep.subr.mxu0 0.0
    %63 = vmatpush1.xpose.msra.mxu0 0.0
    %64 = vmatprep.subr.mxu0 0.0
    %65 = vmatpush1.xpose.msra.mxu0 0.0
    %66 = vmatprep.subr.mxu0 0.0
    %67 = vmatpush1.xpose.msra.mxu0 0.0
    %68 = vmatprep.subr.mxu0 0.0
    %69 = vmatpush1.xpose.msra.mxu0 0.0
    %70 = vmatprep.subr.mxu0 0.0
    %71 = vmatpush1.xpose.msra.mxu0 0.0
    %72 = vmatprep.subr.mxu0 0.0
    %73 = vmatpush1.xpose.msra.mxu0 0.0
    %74 = vmatprep.subr.mxu0 0.0
    %75 = vmatpush1.xpose.msra.mxu0 0.0
    %76 = vmatprep.subr.mxu0 0.0
    %77 = vmatpush1.xpose.msra.mxu0 0.0
    %78 = vmatprep.subr.mxu0 0.0
    %79 = vmatpush1.xpose.msra.mxu0 0.0
    %80 = vmatprep.subr.mxu0 0.0
    %81 = vmatpush1.xpose.msra.mxu0 0.0
    %82 = vmatprep.subr.mxu0 0.0
    %83 = vmatpush1.xpose.msra.mxu0 0.0
    %84 = vmatprep.subr.mxu0 0.0
    %85 = vmatpush1.xpose.msra.mxu0 0.0
    %86 = vmatprep.subr.mxu0 0.0
    %87 = vmatpush1.xpose.msra.mxu0 0.0
    %88 = vmatprep.subr.mxu0 0.0
    %89 = vmatpush1.xpose.msra.mxu0 0.0
    %90 = vmatprep.subr.mxu0 0.0
    %91 = vmatpush1.xpose.msra.mxu0 0.0
    %92 = vmatprep.subr.mxu0 0.0
    %93 = vmatpush1.xpose.msra.mxu0 0.0
    %94 = vmatprep.subr.mxu0 0.0
    %95 = vmatpush1.xpose.msra.mxu0 0.0
    %96 = vmatprep.subr.mxu0 0.0
    %97 = vmatpush1.xpose.msra.mxu0 0.0
    %98 = vmatprep.subr.mxu0 0.0
    %99 = vmatpush1.xpose.msra.mxu0 0.0
    %100 = vmatprep.subr.mxu0 0.0
    %101 = vmatpush1.xpose.msra.mxu0 0.0
    %102 = vmatprep.subr.mxu0 0.0
    %103 = vmatpush1.xpose.msra.mxu0 0.0
    %104 = vmatprep.subr.mxu0 0.0
    %105 = vmatpush1.xpose.msra.mxu0 0.0
    %106 = vmatprep.subr.mxu0 0.0
    %107 = vmatpush1.xpose.msra.mxu0 0.0
    %108 = vmatprep.subr.mxu0 0.0
    %109 = vmatpush1.xpose.msra.mxu0 0.0
    %110 = vmatprep.subr.mxu0 0.0
    %111 = vmatpush1.xpose.msra.mxu0 0.0
    %112 = vmatprep.subr.mxu0 0.0
    %113 = vmatpush1.xpose.msra.mxu0 0.0
    %114 = vmatprep.subr.mxu0 0.0
    %115 = vmatpush1.xpose.msra.mxu0 0.0
    %116 = vmatprep.mubr.f32.mxu0 0.0
    %117 = vmatmul.mubr.f32.gmra.mrb[0].mxu0 %v47
    %v118 = vpop.f32.mrb[0].mxu0
    %v119 = vadd.f32 0.0, %v118
    %v120 = vpop.f32.mrb[0].mxu0
    %121 = vdwg.mxu0
    %v122 = vlaneseq
    %v123 = vshrl.u32 %v122, 7
    %v124 = vlaneseq
    %v125 = vand.u32 %v124, 127
    %vm126 = vcmp.eq.s32.totalorder %v123, %v125
    %v127 = vsel %vm126, %v119, 0.0
    %vm128 = vcmask 64512
    %v129 = vsel %vm128, %v127, 0.0
    %130 = vadd.xlane.f32.xlu0 %v129
    %v131 = vpop.xlane.xlu0 %130
    %v132 = vrot.slane %v131, 4
    %v133 = vadd.f32 %v131, %v132
    %v134 = vrot.slane %v133, 2
    %v135 = vadd.f32 %v133, %v134
    %v136 = vrot.slane %v135, 1
    %v137 = vadd.f32 %v135, %v136
    %s138 = vtos %v137
    %v139 = vsel %vm128, %v119, -inf
    %140 = vmax.xlane.f32.xlu0 %v139
    %v141 = vpop.xlane.xlu0 %140
    %v142 = vsub.f32 %v119, %v141
    %v143 = vmul.f32 %v142, 1.442695
    %v144 = vpow.pop %v143
    %v145 = vsel %vm128, %v144, 0.0
    %146 = vadd.xlane.f32.xlu0 %v145
    %v147 = vpop.xlane.xlu0 %146
    %v148 = vlog2.pop %v147
    %v149 = vmul.f32 %v148, 0.6931472
    %v150 = vadd.f32 %v141, %v149
    %vm151 = vcmask 7168
    %v152 = vsel %vm151, %v150, 0.0
    %153 = vadd.xlane.f32.xlu0 %v152
    %v154 = vpop.xlane.xlu0 %153
    %v155 = vrot.slane %v154, 4
    %v156 = vadd.f32 %v154, %v155
    %v157 = vrot.slane %v156, 2
    %v158 = vadd.f32 %v156, %v157
    %v159 = vrot.slane %v158, 1
    %v160 = vadd.f32 %v158, %v159
    %s161 = vtos %v160
    %v162 = vrot.slane %v139, 4
    %v163 = vmax.f32 %v139, %v162
    %v164 = vrot.slane %v163, 2
    %v165 = vmax.f32 %v163, %v164
    %v166 = vrot.slane %v165, 1
    %v167 = vmax.f32 %v165, %v166
    %v168 = vsub.f32 %v119, %v167
    %v169 = vmul.f32 %v168, 1.442695
    %v170 = vpow.pop %v169
    %v171 = vsel %vm128, %v170, 0.0
    %v172 = vrot.slane %v171, 4
    %v173 = vadd.f32 %v171, %v172
    %v174 = vrot.slane %v173, 2
    %v175 = vadd.f32 %v173, %v174
    %v176 = vrot.slane %v175, 1
    %v177 = vadd.f32 %v175, %v176
    %v178 = vlog2.pop %v177
    %v179 = vmul.f32 %v178, 0.6931472
    %v180 = vadd.f32 %v167, %v179
    %vm181 = vcmask 57344
    %v182 = vsel %vm181, %v180, 0.0
    %183 = vadd.xlane.f32.xlu0 %v182
    %v184 = vpop.xlane.xlu0 %183
    %v185 = vrot.slane %v184, 4
    %v186 = vadd.f32 %v184, %v185
    %v187 = vrot.slane %v186, 2
    %v188 = vadd.f32 %v186, %v187
    %v189 = vrot.slane %v188, 1
    %v190 = vadd.f32 %v188, %v189
    %s191 = vtos %v190
    %s192 = ssub.f32 %s161, %s138
    %s193 = ssub.f32 %s191, %s138
    %s194 = sadd.f32 %s192, %s193
    %s195 = smul.f32 %s194, 0.5
    %v196 = vrcp.pop 8.0
    %s197 = vtos %v196
    %s198 = smul.f32 %s195, %s197
    %v199 = vstv %s198
    %vm200 = vcmask 0
    %201 = vst.msk [vmem:[#allocation8] sm:$0x1] %vm200, %v199
    // Predicated region
    $region22: #{tpu_custom_call.1} parent=1 // pred_check
      _
    $region23: #{tpu_custom_call.1} parent=1 // pred_check_branch
      %203 = sbr.rel (0) target = $region25
    $region24: #{tpu_custom_call.1} parent=1 // pred_region
      %s205 = ssub.s32 16, 16
      %206 = vsyncadd [#allocation5], %s205
      %s208 = sshll.u32 [#allocation8], 4
      %s209 = int_to_ptr.vmem [resolvable:$true] %s208
      %211 = dma.vmem_to_hbm [thread:$0]  %s209, 16, %s3, [#allocation5]
    $region25: #{tpu_custom_call.1} parent=1 // pred_fallthru
      _
    // Predicated region
    $region26: #{tpu_custom_call.1} parent=1 // pred_check
      _
    $region27: #{tpu_custom_call.1} parent=1 // pred_check_branch
      %213 = sbr.rel (0) target = $region29
    $region28: #{tpu_custom_call.1} parent=1 // pred_region
      %214 = dma.done [#allocation5], 16
    $region29: #{tpu_custom_call.1} parent=1 // pred_fallthru
      _
    %215 = vsyncpa [#allocation4], 1
    %216 = vsyncpa [#allocation7], 1
    %217 = vsyncpa [#allocation5], 1

</llo_original>
